<compile_context>
chip_gen: v7x
topology: tpu7x:2x2x1
jax: 0.10.0
libtpu: 0.0.40
codegen_flags: <defaults>
</compile_context>

<pallas_src>
import functools
import math

import jax
import jax.numpy as jnp
from jax.experimental import pallas as pl
from jax.experimental.pallas import tpu as pltpu


# ------------------------------- kernel -------------------------------------

def _rmsnorm_kernel(x_ref, scale_ref, o_ref, *, eps, seg_len, num_seg):
    """One (tm, num_seg*seg_len) tile of 'folded' token rows.

    Each kernel row packs `num_seg` original rows of length `seg_len` side by
    side along the lane axis so that the block's last dim is lane-dense
    (a multiple of 128 whenever folding is enabled).  Statistics are per
    original row (per segment), computed in float32.
    """
    x = x_ref[...].astype(jnp.float32)                    # (tm, num_seg*seg_len)
    parts = []
    for s in range(num_seg):                              # static unroll, small k
        xs = x[:, s * seg_len:(s + 1) * seg_len]
        ms = jnp.mean(xs * xs, axis=-1, keepdims=True)    # f32 statistics
        parts.append(xs * jax.lax.rsqrt(ms + eps))        # rsqrt on the EUP
    y = parts[0] if num_seg == 1 else jnp.concatenate(parts, axis=-1)
    o_ref[...] = (y * scale_ref[...]).astype(o_ref.dtype)  # scale stays f32


# ------------------------------- wrapper -------------------------------------

def _round_up(n, m):
    return ((n + m - 1) // m) * m


def _sublane_multiple(dtype):
    itemsize = jnp.dtype(dtype).itemsize
    return {4: 8, 2: 16, 1: 32}.get(itemsize, 8)


def rmsnorm(x, scale, *, eps=1e-8, target_tile_bytes=3 << 20):
    """RMSNorm over the last axis of x. scale has shape (E,)."""
    orig_shape = x.shape
    E = orig_shape[-1]
    xt = x.reshape(-1, E)
    T = xt.shape[0]

    # ---- lane-dense fold: view (T, E) as (T//k, k*E) with k*E % 128 == 0 ----
    num_seg = 1
    if E % 128 != 0:
        k = 128 // math.gcd(E, 128)
        if k <= 16 and T % k == 0:
            num_seg = k
        # TODO(synk): if E % 128 != 0 and T % k != 0, we fall back to a
        # narrow-lane output block (masked stores); a production path would
        # pad the token axis up to a multiple of k once, outside the hot loop.
    W = num_seg * E
    Tf = T // num_seg
    xf = xt.reshape(Tf, W)

    in_bytes = jnp.dtype(x.dtype).itemsize
    out_bytes = in_bytes
    sub = _sublane_multiple(x.dtype)

    # ---- byte-budgeted row tile (sublane-rounded) ---------------------------
    rows = max(sub, (target_tile_bytes // max(W * in_bytes, 1)) // sub * sub)
    tm = min(rows, _round_up(Tf, sub))
    if Tf > sub:
        # Keep >= 2 grid steps so the "parallel" axis can shard across the two
        # TensorCores; the byte budget naturally gives many more steps for
        # large arrays.
        tm = min(tm, max(sub, _round_up(pl.cdiv(Tf, 2), sub)))
    grid = (pl.cdiv(Tf, tm),)

    # ---- explicit scoped-VMEM budget ----------------------------------------
    tile_in = tm * W * in_bytes
    tile_out = tm * W * out_bytes
    tile_f32 = tm * W * 4
    vmem_needed = (2 * tile_in + 2 * tile_out      # double-buffered in + out
                   + 4 * tile_f32                  # f32 temporaries in-kernel
                   + W * 4 + (4 << 20))            # scale row + slack
    vmem_limit = int(min(max(vmem_needed, 16 << 20), 48 << 20))

    scale_f32 = scale.astype(jnp.float32).reshape(1, E)
    if num_seg > 1:
        scale_f32 = jnp.tile(scale_f32, (1, num_seg))  # (1, W), resident

    cost = pl.CostEstimate(
        flops=5 * T * E,
        transcendentals=T,
        bytes_accessed=T * E * (in_bytes + out_bytes) + E * 4,
    )

    out = pl.pallas_call(
        functools.partial(_rmsnorm_kernel, eps=eps, seg_len=E, num_seg=num_seg),
        grid=grid,
        in_specs=[
            pl.BlockSpec((tm, W), lambda i: (i, 0)),   # token tile
            pl.BlockSpec((1, W), lambda i: (0, 0)),    # f32 scale row (resident)
        ],
        out_specs=pl.BlockSpec((tm, W), lambda i: (i, 0)),
        out_shape=jax.ShapeDtypeStruct((Tf, W), x.dtype),
        compiler_params=pltpu.CompilerParams(
            dimension_semantics=("parallel",),
            vmem_limit_bytes=vmem_limit,
        ),
        cost_estimate=cost,
    )(xf, scale_f32)

    # Free reshapes (row-major contiguous) back to the original shape.
    return out.reshape(orig_shape)


# --------------------------- pure-JAX reference ------------------------------

def _ref_rmsnorm(x, scale, eps=1e-8):
    xf = x.astype(jnp.float32)
    norm = xf * jax.lax.rsqrt(jnp.mean(xf * xf, axis=-1, keepdims=True) + eps)
    return (scale.astype(jnp.float32) * norm).astype(x.dtype)


# ---------------------------------- main -------------------------------------

if __name__ == "__main__":
    # Small shapes consistent with the module: batch=2, seq=8, hidden=32.
    B, S, E = 2, 8, 32
    eps = 1e-8

    key = jax.random.PRNGKey(0)
    k1, k2 = jax.random.split(key)
    x = jax.random.normal(k1, (B, S, E), jnp.float32)
    # Non-trivial scale so the weight multiply is actually verified.
    scale = 1.0 + 0.05 * jax.random.normal(k2, (E,), jnp.float32)

    out = jax.block_until_ready(rmsnorm(x, scale, eps=eps))

    ref = _ref_rmsnorm(x, scale, eps=eps)
    assert out.shape == (B, S, E)
    assert jnp.allclose(out, ref, rtol=1e-5, atol=1e-5), "mismatch vs JAX reference"

    print("KERNEL_OK")
</pallas_src>

<mosaic_0001>
module attributes {stable_mosaic.version = 11 : i64} {
  func.func @_rmsnorm_kernel(%arg0: i32, %arg1: memref<8x128xf32, #tpu.memory_space<vmem>>, %arg2: memref<1x128xf32, #tpu.memory_space<vmem>>, %arg3: memref<8x128xf32, #tpu.memory_space<vmem>>) attributes {dimension_semantics = [#tpu.dimension_semantics<parallel>], iteration_bounds = array<i64: 1>, scalar_prefetch = 0 : i64, scratch_operands = 0 : i64, tpu.core_type = #tpu.core_type<tc>, window_params = [{transform_indices = @transform_0, window_bounds = array<i64: 8, 128>}, {pipeline_mode = #tpu.pipeline_mode<synchronous>, transform_indices = @transform_1, window_bounds = array<i64: 1, 128>}, {transform_indices = @transform_2, window_bounds = array<i64: 8, 128>}]} {
    %c0 = arith.constant 0 : index
    %c0_0 = arith.constant 0 : index
    %0 = vector.load %arg1[%c0, %c0_0] : memref<8x128xf32, #tpu.memory_space<vmem>>, vector<8x128xf32>
    %1 = vector.extract_strided_slice %0 {offsets = [0, 0], sizes = [8, 32], strides = [1, 1]} : vector<8x128xf32> to vector<8x32xf32>
    %2 = arith.mulf %1, %1 : vector<8x32xf32>
    %cst = arith.constant dense<0.000000e+00> : vector<8xf32>
    %3 = vector.multi_reduction <add>, %2, %cst [1] : vector<8x32xf32> to vector<8xf32>
    %4 = vector.shape_cast %3 : vector<8xf32> to vector<8x1xf32>
    %cst_1 = arith.constant 3.200000e+01 : f32
    %5 = vector.broadcast %cst_1 : f32 to vector<8x1xf32>
    %6 = arith.divf %4, %5 : vector<8x1xf32>
    %cst_2 = arith.constant 9.99999993E-9 : f32
    %7 = vector.broadcast %cst_2 : f32 to vector<8x1xf32>
    %8 = arith.addf %6, %7 : vector<8x1xf32>
    %9 = math.rsqrt %8 : vector<8x1xf32>
    %10 = vector.broadcast %9 : vector<8x1xf32> to vector<8x32xf32>
    %11 = arith.mulf %1, %10 : vector<8x32xf32>
    %12 = vector.extract_strided_slice %0 {offsets = [0, 32], sizes = [8, 32], strides = [1, 1]} : vector<8x128xf32> to vector<8x32xf32>
    %13 = arith.mulf %12, %12 : vector<8x32xf32>
    %cst_3 = arith.constant dense<0.000000e+00> : vector<8xf32>
    %14 = vector.multi_reduction <add>, %13, %cst_3 [1] : vector<8x32xf32> to vector<8xf32>
    %15 = vector.shape_cast %14 : vector<8xf32> to vector<8x1xf32>
    %cst_4 = arith.constant 3.200000e+01 : f32
    %16 = vector.broadcast %cst_4 : f32 to vector<8x1xf32>
    %17 = arith.divf %15, %16 : vector<8x1xf32>
    %cst_5 = arith.constant 9.99999993E-9 : f32
    %18 = vector.broadcast %cst_5 : f32 to vector<8x1xf32>
    %19 = arith.addf %17, %18 : vector<8x1xf32>
    %20 = math.rsqrt %19 : vector<8x1xf32>
    %21 = vector.broadcast %20 : vector<8x1xf32> to vector<8x32xf32>
    %22 = arith.mulf %12, %21 : vector<8x32xf32>
    %23 = vector.extract_strided_slice %0 {offsets = [0, 64], sizes = [8, 32], strides = [1, 1]} : vector<8x128xf32> to vector<8x32xf32>
    %24 = arith.mulf %23, %23 : vector<8x32xf32>
    %cst_6 = arith.constant dense<0.000000e+00> : vector<8xf32>
    %25 = vector.multi_reduction <add>, %24, %cst_6 [1] : vector<8x32xf32> to vector<8xf32>
    %26 = vector.shape_cast %25 : vector<8xf32> to vector<8x1xf32>
    %cst_7 = arith.constant 3.200000e+01 : f32
    %27 = vector.broadcast %cst_7 : f32 to vector<8x1xf32>
    %28 = arith.divf %26, %27 : vector<8x1xf32>
    %cst_8 = arith.constant 9.99999993E-9 : f32
    %29 = vector.broadcast %cst_8 : f32 to vector<8x1xf32>
    %30 = arith.addf %28, %29 : vector<8x1xf32>
    %31 = math.rsqrt %30 : vector<8x1xf32>
    %32 = vector.broadcast %31 : vector<8x1xf32> to vector<8x32xf32>
    %33 = arith.mulf %23, %32 : vector<8x32xf32>
    %34 = vector.extract_strided_slice %0 {offsets = [0, 96], sizes = [8, 32], strides = [1, 1]} : vector<8x128xf32> to vector<8x32xf32>
    %35 = arith.mulf %34, %34 : vector<8x32xf32>
    %cst_9 = arith.constant dense<0.000000e+00> : vector<8xf32>
    %36 = vector.multi_reduction <add>, %35, %cst_9 [1] : vector<8x32xf32> to vector<8xf32>
    %37 = vector.shape_cast %36 : vector<8xf32> to vector<8x1xf32>
    %cst_10 = arith.constant 3.200000e+01 : f32
    %38 = vector.broadcast %cst_10 : f32 to vector<8x1xf32>
    %39 = arith.divf %37, %38 : vector<8x1xf32>
    %cst_11 = arith.constant 9.99999993E-9 : f32
    %40 = vector.broadcast %cst_11 : f32 to vector<8x1xf32>
    %41 = arith.addf %39, %40 : vector<8x1xf32>
    %42 = math.rsqrt %41 : vector<8x1xf32>
    %43 = vector.broadcast %42 : vector<8x1xf32> to vector<8x32xf32>
    %44 = arith.mulf %34, %43 : vector<8x32xf32>
    %45 = tpu.concatenate %11, %22, %33, %44 in 1 : vector<8x32xf32>, vector<8x32xf32>, vector<8x32xf32>, vector<8x32xf32> -> vector<8x128xf32>
    %c0_12 = arith.constant 0 : index
    %c0_13 = arith.constant 0 : index
    %46 = vector.load %arg2[%c0_12, %c0_13] : memref<1x128xf32, #tpu.memory_space<vmem>>, vector<1x128xf32>
    %47 = vector.broadcast %46 : vector<1x128xf32> to vector<8x128xf32>
    %48 = arith.mulf %45, %47 : vector<8x128xf32>
    %c0_14 = arith.constant 0 : index
    %c0_15 = arith.constant 0 : index
    %49 = vector.load %arg3[%c0_14, %c0_15] : memref<8x128xf32, #tpu.memory_space<vmem>>, vector<8x128xf32>
    tpu.vector_store %arg3[%c0_14, %c0_15], %48 {strides = array<i32>} : memref<8x128xf32, #tpu.memory_space<vmem>>, vector<8x128xf32>,
    return
  }
  func.func @transform_0(%arg0: i32) -> (i32, i32) {
    %c0_i32 = arith.constant 0 : i32
    %c0_i32_0 = arith.constant 0 : i32
    return %arg0, %c0_i32 : i32, i32
  }
  func.func @transform_1(%arg0: i32) -> (i32, i32) {
    %c0_i32 = arith.constant 0 : i32
    %c0_i32_0 = arith.constant 0 : i32
    %c0_i32_1 = arith.constant 0 : i32
    return %c0_i32, %c0_i32_0 : i32, i32
  }
  func.func @transform_2(%arg0: i32) -> (i32, i32) {
    %c0_i32 = arith.constant 0 : i32
    %c0_i32_0 = arith.constant 0 : i32
    return %arg0, %c0_i32 : i32, i32
  }
}

</mosaic_0001>

<llo_original>
// kernel: tpu_custom_call.1
$region0: #{tpu_custom_call.1}
  #allocation0 [shape = 'u32[]', space=smem, size = 0x4, offset = 0x4, fixed_abs, tag = 'smem constant byte address 0x4 - core index']
  #allocation1 [shape = 'u32[144,128]{1,0:T(1,128)}', space=vmem, size = 0x12000, scoped, tag = 'internal scratch']
  %s0 = inlined_call_operand.hbm [shape: f32[4,128], index: 0, kind: input, shape index: {}]
  %s1 = inlined_call_operand.vmem [shape: f32[1,128], index: 1, kind: input, shape index: {}]
  %s2 = inlined_call_operand.hbm [shape: f32[4,128], index: 2, kind: output, shape index: {}]
  %s3 = sld [smem:[#allocation0]]
  $region22: #{tpu_custom_call.1} parent=0
    _
  %s5 = ssub.s32 1, %s3
  %s6 = scalar_select 0, %s5, %s3
  $region1: #{tpu_custom_call.1} parent=0
    #allocation2 [shape = 'u8[4096]{0}', space=vmem, size = 0x1000, scoped, tag = 'input window, operand 0, single buffered']
    #allocation3 [shape = 's32[1]{0}', space=sflag, size = 0x4, scoped, tag = 'scoped memory for tpu_custom_call.1']
    #allocation4 [shape = 's32[1]{0}', space=sflag, size = 0x4, scoped, tag = 'scoped memory for tpu_custom_call.1']
    #allocation5 [shape = 'u8[4096]{0}', space=vmem, size = 0x1000, scoped, tag = 'output window, operand 0, single buffered']
    %7 = vsyncpa [#allocation3], 0
    %8 = vsyncpa [#allocation4], 0
    // Predicated region
    $region2: #{tpu_custom_call.1} parent=1 // pred_check
      _
    $region3: #{tpu_custom_call.1} parent=1 // pred_check_branch
      %10 = sbr.rel (0) target = $region5
    $region4: #{tpu_custom_call.1} parent=1 // pred_region
      %s12 = ssub.s32 128, 64
      %13 = vsyncadd [#allocation3], %s12
      %s14 = sshll.u32 [#allocation2], 4
      %s15 = int_to_ptr.vmem [resolvable:$true] %s14
      %20 = dma.hbm_to_vmem [thread:$0]  %s0, 64, %s15, [#allocation3], 64, 64, 4
    $region5: #{tpu_custom_call.1} parent=1 // pred_fallthru
      _
    // Predicated region
    $region6: #{tpu_custom_call.1} parent=1 // pred_check
      _
    $region7: #{tpu_custom_call.1} parent=1 // pred_check_branch
      %22 = sbr.rel (0) target = $region9
    $region8: #{tpu_custom_call.1} parent=1 // pred_region
      _
    $region9: #{tpu_custom_call.1} parent=1 // pred_fallthru
      _
    // Predicated region
    $region10: #{tpu_custom_call.1} parent=1 // pred_check
      _
    $region11: #{tpu_custom_call.1} parent=1 // pred_check_branch
      %24 = sbr.rel (0) target = $region13
    $region12: #{tpu_custom_call.1} parent=1 // pred_region
      %25 = dma.done [#allocation3], 128
    $region13: #{tpu_custom_call.1} parent=1 // pred_fallthru
      _
    %v26 = vld [vmem:[#allocation2] sm:$0xff]
    %v27 = vmul.f32 %v26, %v26
    %vm28 = vcmask 261120
    %v29 = vsel %vm28, %v27, 0.0
    %30 = vadd.xlane.f32.xlu0 %v29
    %v31 = vpop.xlane.xlu0 %30
    %v32 = vrcp.pop 32.0
    %v33 = vmul.f32 %v31, %v32
    %v34 = vadd.f32 %v33, 1e-08
    %v35 = vrsqrt.pop %v34
    %v36 = vmul.f32 %v26, %v35
    %38 = vrot.lane.b32.xlu0 %v27, 96
    %v39 = vpop.permute.xlu0 %38
    %v41 = vsel %vm28, %v39, 0.0
    %42 = vadd.xlane.f32.xlu0 %v41
    %v43 = vpop.xlane.xlu0 %42
    %v44 = vmul.f32 %v43, %v32
    %v45 = vadd.f32 %v44, 1e-08
    %v46 = vrsqrt.pop %v45
    %v47 = vmul.f32 %v26, %v46
    %48 = vrot.lane.b32.xlu0 %v27, 64
    %v49 = vpop.permute.xlu0 %48
    %v51 = vsel %vm28, %v49, 0.0
    %52 = vadd.xlane.f32.xlu0 %v51
    %v53 = vpop.xlane.xlu0 %52
    %v54 = vmul.f32 %v53, %v32
    %v55 = vadd.f32 %v54, 1e-08
    %v56 = vrsqrt.pop %v55
    %v57 = vmul.f32 %v26, %v56
    %58 = vrot.lane.b32.xlu0 %v27, 32
    %v59 = vpop.permute.xlu0 %58
    %v61 = vsel %vm28, %v59, 0.0
    %62 = vadd.xlane.f32.xlu0 %v61
    %v63 = vpop.xlane.xlu0 %62
    %v64 = vmul.f32 %v63, %v32
    %v65 = vadd.f32 %v64, 1e-08
    %v66 = vrsqrt.pop %v65
    %v67 = vmul.f32 %v26, %v66
    %v68 = vsel %vm28, %v36, %v47
    %vm69 = vcmask 523264
    %v70 = vsel %vm69, %v68, %v57
    %vm71 = vcmask 785408
    %v72 = vsel %vm71, %v70, %v67
    %v73 = vld [vmem:[%s1] sm:$0x1]
    %v75 = vlaneseq
    %v76 = vshrl.u32 %v75, 7
    %v77 = vsub.s32 0, %v76
    %v78 = vrot.slane %v73, %v77
    %v80 = vmul.f32 %v72, %v78
    %81 = vst [vmem:[#allocation5] sm:$0xff] %v80
    // Predicated region
    $region14: #{tpu_custom_call.1} parent=1 // pred_check
      _
    $region15: #{tpu_custom_call.1} parent=1 // pred_check_branch
      %83 = sbr.rel (0) target = $region17
    $region16: #{tpu_custom_call.1} parent=1 // pred_region
      %s85 = ssub.s32 128, 64
      %86 = vsyncadd [#allocation4], %s85
      %s87 = sshll.u32 [#allocation5], 4
      %s88 = int_to_ptr.vmem [resolvable:$true] %s87
      %93 = dma.vmem_to_hbm [thread:$0]  %s88, 64, %s2, [#allocation4], 64, 64, 4
    $region17: #{tpu_custom_call.1} parent=1 // pred_fallthru
      _
    // Predicated region
    $region18: #{tpu_custom_call.1} parent=1 // pred_check
      _
    $region19: #{tpu_custom_call.1} parent=1 // pred_check_branch
      %95 = sbr.rel (0) target = $region21
    $region20: #{tpu_custom_call.1} parent=1 // pred_region
      %96 = dma.done [#allocation4], 128
    $region21: #{tpu_custom_call.1} parent=1 // pred_fallthru
      _
    %97 = vsyncpa [#allocation3], 1
    %98 = vsyncpa [#allocation4], 1

</llo_original>
